<compile_context>
chip_gen: v6e
topology: v6e:2x2x1
jax: 0.10.0
libtpu: 0.0.40
codegen_flags: <defaults>
</compile_context>

<pallas_src>
import functools

import jax
import jax.numpy as jnp
import numpy as np
from jax.experimental import pallas as pl
from jax.experimental.pallas import tpu as pltpu

PUSH_EPS = 2e-3   # mcfg.push_eps
_LANE = 128
_BIG = 1e9        # padding value for fake faces -> huge score, never selected


def _round_up(x, m):
    return (x + m - 1) // m * m


def collision_push_kernel(pos_ref, face_a_ref, face_b_ref, out_ref, *, push_eps):
    """One (batch, vertex-tile) grid step.

    pos_ref    : (3, TN)      xyz on sublanes, vertices lane-dense
    face_a_ref : (F_pad, 4)   [cx cy cz ||c||^2], faces on sublanes
    face_b_ref : (16, F_pad)  rows 0-2 centroid, rows 8-10 unit normal, faces lane-dense
    out_ref    : (3, TN)      pushed-out positions
    """
    pos = pos_ref[...]                       # (3, TN)
    face_a = face_a_ref[...]                 # (F_pad, 4)
    cent = face_a[:, 0:3]                    # (F_pad, 3)
    fsq = face_a[:, 3:4]                     # (F_pad, 1)
    f_pad = face_a.shape[0]

    # knn_points(pred_pos, face_centroids), k=1:
    #   argmin_f ||p - c_f||^2  ==  argmin_f (||c_f||^2 - 2 c_f . p)
    cp = jnp.dot(cent, pos, preferred_element_type=jnp.float32)    # (F_pad, TN) MXU
    score = fsq - 2.0 * cp                                         # (F_pad, TN)

    min_score = jnp.min(score, axis=0, keepdims=True)              # (1, TN)
    iota_f = jax.lax.broadcasted_iota(jnp.int32, score.shape, 0)   # (F_pad, TN)
    # first (lowest-index) minimum -> replicates knn_points' argmin tie-break
    nn_idx = jnp.min(jnp.where(score <= min_score, iota_f, f_pad),
                     axis=0, keepdims=True)                        # (1, TN)
    onehot = (iota_f == nn_idx).astype(jnp.float32)                # (F_pad, TN)

    # fused gather of nn centroid + nn normal via a single one-hot MXU matmul
    g = jnp.dot(face_b_ref[...], onehot,
                preferred_element_type=jnp.float32)                # (16, TN)
    nn_pt = g[0:3, :]                                              # (3, TN)
    nn_nrm = g[8:11, :]                                            # (3, TN)

    # signed distance along the face normal, clamp, push out
    distance = jnp.sum((pos - nn_pt) * nn_nrm, axis=0, keepdims=True)  # (1, TN)
    interpenetration = jnp.minimum(distance - push_eps, 0.0)
    # NOTE: the intermediate `direction_upd` assignments in the PyTorch code
    # are dead (overwritten); the effective shift is interpenetration * normal.
    out_ref[...] = pos - interpenetration * nn_nrm


def _pick_tile(total_cols, f_pad):
    """Largest vertex tile (multiple of 128) that keeps ~5 live (F_pad, TN)
    f32 temps comfortably inside scoped VMEM on every generation (v7x: 64 MiB
    physical)."""
    budget = 16 * 1024 * 1024
    for tn in (1024, 512, 256, 128):
        if total_cols % tn == 0 and 5 * f_pad * tn * 4 <= budget:
            return tn
    # TODO(synk): for obstacle meshes so large that even TN=128 blows VMEM, a
    # streaming-F inner loop with running-argmin accumulators would be needed.
    return 128


def remove_collisions(cloth_pos, cloth_prev_pos, obstacle_pos, obstacle_faces,
                      push_eps=PUSH_EPS):
    """Pallas equivalent of Runner._remove_collisions (the i==0 step of forward)."""
    cloth_pos = cloth_pos.astype(jnp.float32)
    cloth_prev_pos = cloth_prev_pos.astype(jnp.float32)
    obstacle_pos = obstacle_pos.astype(jnp.float32)

    B, N, _ = cloth_pos.shape
    F = obstacle_faces.shape[0]
    n_pad = _round_up(N, _LANE)
    nt = 2 * n_pad                  # pos and prev_pos stacked along the lane axis
    f_pad = _round_up(F, 8)

    # ---- O(F) per-batch face precompute (glue, hoisted out of the per-tile
    # hot loop): centroid = gathered face verts mean, n = normalize(cross(v0-v2, v1-v2))
    fverts = obstacle_pos[:, obstacle_faces, :]                    # (B, F, 3, 3)
    centroid = fverts.mean(axis=2)                                 # (B, F, 3)
    e1 = fverts[:, :, 0] - fverts[:, :, 2]
    e2 = fverts[:, :, 1] - fverts[:, :, 2]
    nrm = jnp.cross(e1, e2)
    nrm = nrm * jax.lax.rsqrt(jnp.sum(nrm * nrm, axis=-1, keepdims=True) + 1e-30)

    centroid = jnp.pad(centroid, ((0, 0), (0, f_pad - F), (0, 0)),
                       constant_values=_BIG)        # padded faces never win 1-NN
    nrm = jnp.pad(nrm, ((0, 0), (0, f_pad - F), (0, 0)))
    fsq = jnp.sum(centroid * centroid, axis=-1, keepdims=True)     # (B, F_pad, 1)

    face_a = jnp.concatenate([centroid, fsq], axis=-1)             # (B, F_pad, 4)
    face_b = jnp.zeros((B, 16, f_pad), jnp.float32)                # (B, 16, F_pad)
    face_b = face_b.at[:, 0:3, :].set(jnp.transpose(centroid, (0, 2, 1)))
    face_b = face_b.at[:, 8:11, :].set(jnp.transpose(nrm, (0, 2, 1)))

    # ---- lane-dense packed positions: (B, 3, 2*n_pad) = [ pos | prev_pos ]
    def _t_pad(x):
        x = jnp.transpose(x, (0, 2, 1))                            # (B, 3, N)
        return jnp.pad(x, ((0, 0), (0, 0), (0, n_pad - N)))
    packed = jnp.concatenate([_t_pad(cloth_pos), _t_pad(cloth_prev_pos)], axis=-1)

    tn = _pick_tile(nt, f_pad)
    kernel = functools.partial(collision_push_kernel, push_eps=float(push_eps))
    out = pl.pallas_call(
        kernel,
        out_shape=jax.ShapeDtypeStruct((B, 3, nt), jnp.float32),
        grid=(B, nt // tn),
        in_specs=[pl.BlockSpec((None, 3, tn), lambda b, t: (b, 0, t)),
                  pl.BlockSpec((None, f_pad, 4), lambda b, t: (b, 0, 0)),
                  pl.BlockSpec((None, 16, f_pad), lambda b, t: (b, 0, 0))],
        out_specs=pl.BlockSpec((None, 3, tn), lambda b, t: (b, 0, t)),
        compiler_params=pltpu.CompilerParams(
            dimension_semantics=("parallel", "parallel"),
            vmem_limit_bytes=48 * 1024 * 1024),
    )(packed, face_a, face_b)

    new_pos = jnp.transpose(out[:, :, :N], (0, 2, 1))              # (B, N, 3)
    new_prev = jnp.transpose(out[:, :, n_pad:n_pad + N], (0, 2, 1))
    return new_pos, new_prev


def make_ts_tensor(ts, B):
    """Runner.make_ts_tensor (trivial glue)."""
    return jnp.ones((B, 1), jnp.float32) * ts


# ---------------- pure-JAX reference (for correctness check) ----------------
def _reference_remove_collisions(cloth_pos, prev_pos, obstacle_pos, faces, push_eps):
    fverts = obstacle_pos[:, faces, :]                        # (B, F, 3, 3)
    centroid = fverts.mean(axis=2)                            # (B, F, 3)
    e1 = fverts[:, :, 0] - fverts[:, :, 2]
    e2 = fverts[:, :, 1] - fverts[:, :, 2]
    n = jnp.cross(e1, e2)
    n = n * jax.lax.rsqrt(jnp.sum(n * n, axis=-1, keepdims=True) + 1e-30)

    def shift(pos):
        d2 = jnp.sum((pos[:, :, None, :] - centroid[:, None, :, :]) ** 2, axis=-1)
        idx = jnp.argmin(d2, axis=-1)                         # (B, N)
        nn_points = jnp.take_along_axis(centroid, idx[..., None], axis=1)
        nn_normals = jnp.take_along_axis(n, idx[..., None], axis=1)
        direction = pos - nn_points
        distance = jnp.sum(direction * nn_normals, axis=-1, keepdims=True)
        interp = jnp.minimum(distance - push_eps, 0.0)
        return interp * nn_normals

    return cloth_pos - shift(cloth_pos), prev_pos - shift(prev_pos)


# TODO(synk): the external GNN `self.model(...)`, the `criterion_dict` losses,
# the optimizer/scheduler step (incl. grad clipping) and the random material
# sampling (`set_random_material`) are outside this module's own compute and
# are not translated.

if __name__ == "__main__":
    key = jax.random.PRNGKey(0)
    B, N_CLOTH, M_OBS, F_FACES = 2, 64, 16, 24

    k1, k2, k3 = jax.random.split(key, 3)
    cloth_pos = jax.random.normal(k1, (B, N_CLOTH, 3), jnp.float32) * 0.5
    cloth_prev_pos = cloth_pos + 0.01 * jax.random.normal(k2, (B, N_CLOTH, 3), jnp.float32)
    obstacle_pos = jax.random.normal(k3, (B, M_OBS, 3), jnp.float32) * 0.5

    # deterministic, non-degenerate obstacle faces (== faces_batch.T)
    fi = jnp.arange(F_FACES, dtype=jnp.int32)
    obstacle_faces = jnp.stack([fi % M_OBS, (fi + 3) % M_OBS, (fi + 7) % M_OBS], axis=1)

    new_pos, new_prev = remove_collisions(cloth_pos, cloth_prev_pos,
                                          obstacle_pos, obstacle_faces)
    jax.block_until_ready((new_pos, new_prev))

    ref_pos, ref_prev = _reference_remove_collisions(
        cloth_pos, cloth_prev_pos, obstacle_pos, obstacle_faces, PUSH_EPS)

    np.testing.assert_allclose(np.asarray(new_pos), np.asarray(ref_pos),
                               rtol=1e-4, atol=1e-5)
    np.testing.assert_allclose(np.asarray(new_prev), np.asarray(ref_prev),
                               rtol=1e-4, atol=1e-5)

    # trivial glue from the Runner (timestep tensor), kept in plain JAX
    _ = jax.block_until_ready(make_ts_tensor(1.0 / 30.0, B))

    print("KERNEL_OK")
</pallas_src>

<mosaic_0001>
module attributes {stable_mosaic.version = 11 : i64} {
  func.func @collision_push_kernel(%arg0: i32, %arg1: i32, %arg2: memref<1x3x256xf32, #tpu.memory_space<vmem>>, %arg3: memref<1x24x4xf32, #tpu.memory_space<vmem>>, %arg4: memref<1x16x24xf32, #tpu.memory_space<vmem>>, %arg5: memref<1x3x256xf32, #tpu.memory_space<vmem>>) attributes {dimension_semantics = [#tpu.dimension_semantics<parallel>, #tpu.dimension_semantics<parallel>], iteration_bounds = array<i64: 2, 1>, scalar_prefetch = 0 : i64, scratch_operands = 0 : i64, tpu.core_type = #tpu.core_type<tc>, window_params = [{transform_indices = @transform_0, window_bounds = array<i64: 1, 3, 256>}, {transform_indices = @transform_1, window_bounds = array<i64: 1, 24, 4>}, {transform_indices = @transform_2, window_bounds = array<i64: 1, 16, 24>}, {transform_indices = @transform_3, window_bounds = array<i64: 1, 3, 256>}]} {
    %c0 = arith.constant 0 : index
    %c0_0 = arith.constant 0 : index
    %c0_1 = arith.constant 0 : index
    %0 = vector.load %arg2[%c0, %c0_0, %c0_1] : memref<1x3x256xf32, #tpu.memory_space<vmem>>, vector<1x3x256xf32>
    %1 = vector.shape_cast %0 : vector<1x3x256xf32> to vector<3x256xf32>
    %c0_2 = arith.constant 0 : index
    %c0_3 = arith.constant 0 : index
    %c0_4 = arith.constant 0 : index
    %2 = vector.load %arg3[%c0_2, %c0_3, %c0_4] : memref<1x24x4xf32, #tpu.memory_space<vmem>>, vector<1x24x4xf32>
    %3 = vector.shape_cast %2 : vector<1x24x4xf32> to vector<24x4xf32>
    %4 = vector.extract_strided_slice %3 {offsets = [0, 0], sizes = [24, 3], strides = [1, 1]} : vector<24x4xf32> to vector<24x3xf32>
    %5 = vector.extract_strided_slice %3 {offsets = [0, 3], sizes = [24, 1], strides = [1, 1]} : vector<24x4xf32> to vector<24x1xf32>
    %cst = arith.constant dense<0.000000e+00> : vector<24x256xf32>
    %6 = tpu.matmul %4, %1, %cst {dimension_numbers = #tpu.dot_dimension_numbers<[1], [0], [0], [1], [0, 0, 1, 1], [], []>} : vector<24x3xf32>, vector<3x256xf32>, vector<24x256xf32> -> vector<24x256xf32>
    %cst_5 = arith.constant 2.000000e+00 : f32
    %7 = vector.broadcast %cst_5 : f32 to vector<24x256xf32>
    %8 = arith.mulf %7, %6 : vector<24x256xf32>
    %9 = vector.broadcast %5 : vector<24x1xf32> to vector<24x256xf32>
    %10 = arith.subf %9, %8 : vector<24x256xf32>
    %cst_6 = arith.constant dense<0x7F800000> : vector<256xf32>
    %11 = vector.multi_reduction <minimumf>, %10, %cst_6 [0] : vector<24x256xf32> to vector<256xf32>
    %12 = vector.shape_cast %11 : vector<256xf32> to vector<1x256xf32>
    %13 = tpu.iota {dimensions = array<i32: 0>} : vector<24x256xi32>
    %14 = vector.broadcast %12 : vector<1x256xf32> to vector<24x256xf32>
    %15 = arith.cmpf ole, %10, %14 : vector<24x256xf32>
    %c24_i32 = arith.constant 24 : i32
    %16 = vector.broadcast %c24_i32 : i32 to vector<24x256xi32>
    %17 = arith.select %15, %13, %16 : vector<24x256xi1>, vector<24x256xi32>
    %cst_7 = arith.constant dense<2147483647> : vector<256xi32>
    %18 = vector.multi_reduction <minsi>, %17, %cst_7 [0] : vector<24x256xi32> to vector<256xi32>
    %19 = vector.shape_cast %18 : vector<256xi32> to vector<1x256xi32>
    %20 = vector.broadcast %19 : vector<1x256xi32> to vector<24x256xi32>
    %21 = arith.cmpi eq, %13, %20 : vector<24x256xi32>
    %22 = arith.extui %21 : vector<24x256xi1> to vector<24x256xi32>
    %23 = arith.sitofp %22 : vector<24x256xi32> to vector<24x256xf32>
    %c0_8 = arith.constant 0 : index
    %c0_9 = arith.constant 0 : index
    %c0_10 = arith.constant 0 : index
    %24 = vector.load %arg4[%c0_8, %c0_9, %c0_10] : memref<1x16x24xf32, #tpu.memory_space<vmem>>, vector<1x16x24xf32>
    %25 = vector.shape_cast %24 : vector<1x16x24xf32> to vector<16x24xf32>
    %cst_11 = arith.constant dense<0.000000e+00> : vector<16x256xf32>
    %26 = tpu.matmul %25, %23, %cst_11 {dimension_numbers = #tpu.dot_dimension_numbers<[1], [0], [0], [1], [0, 0, 1, 1], [], []>} : vector<16x24xf32>, vector<24x256xf32>, vector<16x256xf32> -> vector<16x256xf32>
    %27 = vector.extract_strided_slice %26 {offsets = [0, 0], sizes = [3, 256], strides = [1, 1]} : vector<16x256xf32> to vector<3x256xf32>
    %28 = vector.extract_strided_slice %26 {offsets = [8, 0], sizes = [3, 256], strides = [1, 1]} : vector<16x256xf32> to vector<3x256xf32>
    %29 = arith.subf %1, %27 : vector<3x256xf32>
    %30 = arith.mulf %29, %28 : vector<3x256xf32>
    %cst_12 = arith.constant dense<0.000000e+00> : vector<256xf32>
    %31 = vector.multi_reduction <add>, %30, %cst_12 [0] : vector<3x256xf32> to vector<256xf32>
    %32 = vector.shape_cast %31 : vector<256xf32> to vector<1x256xf32>
    %cst_13 = arith.constant 2.000000e-03 : f32
    %33 = vector.broadcast %cst_13 : f32 to vector<1x256xf32>
    %34 = arith.subf %32, %33 : vector<1x256xf32>
    %cst_14 = arith.constant 0.000000e+00 : f32
    %35 = vector.broadcast %cst_14 : f32 to vector<1x256xf32>
    %36 = arith.minimumf %34, %35 : vector<1x256xf32>
    %37 = vector.broadcast %36 : vector<1x256xf32> to vector<3x256xf32>
    %38 = arith.mulf %37, %28 : vector<3x256xf32>
    %39 = arith.subf %1, %38 : vector<3x256xf32>
    %c0_15 = arith.constant 0 : index
    %c0_16 = arith.constant 0 : index
    %c0_17 = arith.constant 0 : index
    %40 = vector.load %arg5[%c0_15, %c0_16, %c0_17] : memref<1x3x256xf32, #tpu.memory_space<vmem>>, vector<1x3x256xf32>
    %41 = vector.shape_cast %40 : vector<1x3x256xf32> to vector<3x256xf32>
    %42 = vector.shape_cast %39 : vector<3x256xf32> to vector<1x3x256xf32>
    tpu.vector_store %arg5[%c0_15, %c0_16, %c0_17], %42 {strides = array<i32>} : memref<1x3x256xf32, #tpu.memory_space<vmem>>, vector<1x3x256xf32>,
    return
  }
  func.func @transform_0(%arg0: i32, %arg1: i32) -> (i32, i32, i32) {
    %c0_i32 = arith.constant 0 : i32
    %c0_i32_0 = arith.constant 0 : i32
    return %arg0, %c0_i32, %arg1 : i32, i32, i32
  }
  func.func @transform_1(%arg0: i32, %arg1: i32) -> (i32, i32, i32) {
    %c0_i32 = arith.constant 0 : i32
    %c0_i32_0 = arith.constant 0 : i32
    %c0_i32_1 = arith.constant 0 : i32
    return %arg0, %c0_i32, %c0_i32_0 : i32, i32, i32
  }
  func.func @transform_2(%arg0: i32, %arg1: i32) -> (i32, i32, i32) {
    %c0_i32 = arith.constant 0 : i32
    %c0_i32_0 = arith.constant 0 : i32
    %c0_i32_1 = arith.constant 0 : i32
    return %arg0, %c0_i32, %c0_i32_0 : i32, i32, i32
  }
  func.func @transform_3(%arg0: i32, %arg1: i32) -> (i32, i32, i32) {
    %c0_i32 = arith.constant 0 : i32
    %c0_i32_0 = arith.constant 0 : i32
    return %arg0, %c0_i32, %arg1 : i32, i32, i32
  }
}

</mosaic_0001>

<llo_original>
// kernel: tpu_custom_call.1
$region0: #{tpu_custom_call.1}
  #allocation0 [shape = 'u32[]', space=smem, size = 0x4, offset = 0x4, fixed_abs, tag = 'smem constant byte address 0x4 - core index']
  #allocation1 [shape = 'u32[144,128]{1,0:T(1,128)}', space=vmem, size = 0x12000, scoped, tag = 'internal scratch']
  %s0 = inlined_call_operand.vmem [shape: f32[2,3,256], index: 0, kind: input, shape index: {}]
  %s1 = inlined_call_operand.vmem [shape: f32[2,24,4], index: 1, kind: input, shape index: {}]
  %s2 = inlined_call_operand.vmem [shape: f32[2,16,24], index: 2, kind: input, shape index: {}]
  %s3 = inlined_call_operand.vmem [shape: f32[2,3,256], index: 3, kind: output, shape index: {}]
  %s4 = sld [smem:[#allocation0]]
  $region45: #{tpu_custom_call.1} parent=0
    _
  %s6 = ssub.s32 1, %s4
  %s7 = scalar_select 0, %s6, %s4
  loop: start=0, step=1, limit=4
  $region2: #{tpu_custom_call.1} parent=0 // loop_pre_header
    _
  $region3: #{tpu_custom_call.1} parent=0 // loop_header
    %s9 = sphi 0, %s13
    %p10 = scmp.ge.s32.totalorder %s9, 4
    %s16 = sphi 0, %s28
    %s17 = sphi 0, %s24
    %s18 = sphi 0, %s16
    %s19 = sphi 0, %s17
    %s20 = sphi 0, %s18
    %s21 = sphi 0, %s19
    %s33 = sphi 0, %s35
    %s36 = sphi 0, %s33
    %s37 = sphi 0, %s36
    %s53 = sphi 0, %s37
    %s59 = sphi 0, %s61
    %s62 = sphi 0, %s59
    %s63 = sphi 0, %s62
    %s79 = sphi 0, %s63
    %s85 = sphi 0, %s87
    %s88 = sphi 0, %s85
    %s89 = sphi 0, %s88
    %s105 = sphi 0, %s89
    %s113 = sphi 0, %s115
    %s116 = sphi 0, %s113
    %s117 = sphi 0, %s116
    %s133 = sphi 0, %s117
  $region4: #{tpu_custom_call.1} parent=0 // loop_header_branch
    %12 = sbr.rel (%p10) target = $region8
  $region5: #{tpu_custom_call.1} parent=0 // loop_body
    %s14 = ssub.s32 %s9, 1
    %s15 = ssub.s32 %s9, 2
    %s22 = sadd.s32 1, %s17
    %p23 = scmp.ge.s32.totalorder %s22, 1
    %s24 = scalar_select %p23, 0, %s22
    %s25 = sadd.s32 1, %s16
    %s26 = scalar_select %p23, %s25, %s16
    %p27 = scmp.ge.s32.totalorder %s26, 2
    %s28 = scalar_select %p27, 0, %s26
    %s29 = ssub.s32 %s16, %s28
    %s30 = ssub.s32 %s17, %s24
    %s31 = sor.u32 %s29, %s30
    %p32 = scmp.eq.s32.totalorder %s31, 0
    %s34 = sadd.s32 %s33, 1
    %s35 = scalar_select %p32, %s33, %s34
    %p38 = pneg %p32
    %p39 = scmp.eq.s32.totalorder %s9, 1
    %p40 = por %p38, %p39
    %p41 = scmp.ne.s32.totalorder %s33, %s36
    %p42 = scmp.eq.s32.totalorder %s9, 0
    %p43 = por %p41, %p42
    %p44 = scmp.ne.s32.totalorder %s33, %s36
    %p45 = scmp.eq.s32.totalorder %s14, 1
    %p46 = por %p44, %p45
    %p47 = scmp.ne.s32.totalorder %s36, %s37
    %p48 = scmp.eq.s32.totalorder %s14, 0
    %p49 = por %p47, %p48
    %p50 = scmp.ne.s32.totalorder %s36, %s37
    %p51 = scmp.eq.s32.totalorder %s15, 1
    %p52 = por %p50, %p51
    %p54 = scmp.ne.s32.totalorder %s37, %s53
    %p55 = scmp.eq.s32.totalorder %s15, 0
    %p56 = por %p54, %p55
    %s57 = ssub.s32 %s16, %s28
    %p58 = scmp.eq.s32.totalorder %s57, 0
    %s60 = sadd.s32 %s59, 1
    %s61 = scalar_select %p58, %s59, %s60
    %p64 = pneg %p58
    %p65 = scmp.eq.s32.totalorder %s9, 1
    %p66 = por %p64, %p65
    %p67 = scmp.ne.s32.totalorder %s59, %s62
    %p68 = scmp.eq.s32.totalorder %s9, 0
    %p69 = por %p67, %p68
    %p70 = scmp.ne.s32.totalorder %s59, %s62
    %p71 = scmp.eq.s32.totalorder %s14, 1
    %p72 = por %p70, %p71
    %p73 = scmp.ne.s32.totalorder %s62, %s63
    %p74 = scmp.eq.s32.totalorder %s14, 0
    %p75 = por %p73, %p74
    %p76 = scmp.ne.s32.totalorder %s62, %s63
    %p77 = scmp.eq.s32.totalorder %s15, 1
    %p78 = por %p76, %p77
    %p80 = scmp.ne.s32.totalorder %s63, %s79
    %p81 = scmp.eq.s32.totalorder %s15, 0
    %p82 = por %p80, %p81
    %s83 = ssub.s32 %s16, %s28
    %p84 = scmp.eq.s32.totalorder %s83, 0
    %s86 = sadd.s32 %s85, 1
    %s87 = scalar_select %p84, %s85, %s86
    %p90 = pneg %p84
    %p91 = scmp.eq.s32.totalorder %s9, 1
    %p92 = por %p90, %p91
    %p93 = scmp.ne.s32.totalorder %s85, %s88
    %p94 = scmp.eq.s32.totalorder %s9, 0
    %p95 = por %p93, %p94
    %p96 = scmp.ne.s32.totalorder %s85, %s88
    %p97 = scmp.eq.s32.totalorder %s14, 1
    %p98 = por %p96, %p97
    %p99 = scmp.ne.s32.totalorder %s88, %s89
    %p100 = scmp.eq.s32.totalorder %s14, 0
    %p101 = por %p99, %p100
    %p102 = scmp.ne.s32.totalorder %s88, %s89
    %p103 = scmp.eq.s32.totalorder %s15, 1
    %p104 = por %p102, %p103
    %p106 = scmp.ne.s32.totalorder %s89, %s105
    %p107 = scmp.eq.s32.totalorder %s15, 0
    %p108 = por %p106, %p107
    %s109 = ssub.s32 %s16, %s28
    %s110 = ssub.s32 %s17, %s24
    %s111 = sor.u32 %s109, %s110
    %p112 = scmp.eq.s32.totalorder %s111, 0
    %s114 = sadd.s32 %s113, 1
    %s115 = scalar_select %p112, %s113, %s114
    %p118 = pneg %p112
    %p119 = scmp.eq.s32.totalorder %s9, 1
    %p120 = por %p118, %p119
    %p121 = scmp.ne.s32.totalorder %s113, %s116
    %p122 = scmp.eq.s32.totalorder %s9, 0
    %p123 = por %p121, %p122
    %p124 = scmp.ne.s32.totalorder %s113, %s116
    %p125 = scmp.eq.s32.totalorder %s14, 1
    %p126 = por %p124, %p125
    %p127 = scmp.ne.s32.totalorder %s116, %s117
    %p128 = scmp.eq.s32.totalorder %s14, 0
    %p129 = por %p127, %p128
    %p130 = scmp.ne.s32.totalorder %s116, %s117
    %p131 = scmp.eq.s32.totalorder %s15, 1
    %p132 = por %p130, %p131
    %p134 = scmp.ne.s32.totalorder %s117, %s133
    %p135 = scmp.eq.s32.totalorder %s15, 0
    %p136 = por %p134, %p135
    %p137 = scmp.le.s32.totalorder 1, %s9
    %p138 = scmp.lt.s32.totalorder %s9, 3
    %p139 = pnand %p137, %p138
    %p140 = pneg %p139
    // Predicated region
    $region9: #{tpu_custom_call.1} parent=5 // pred_check
      _
    $region10: #{tpu_custom_call.1} parent=5 // pred_check_branch
      %142 = sbr.rel (%p139) target = $region12
    $region11: #{tpu_custom_call.1} parent=5 // pred_region
      %s143 = ssub.s32 %s9, 1
    $region12: #{tpu_custom_call.1} parent=5 // pred_fallthru
      _
    %p144 = scmp.lt.s32.totalorder %s9, 2
    // Predicated region
    $region13: #{tpu_custom_call.1} parent=5 // pred_check
      %p145 = pneg %p144
    $region14: #{tpu_custom_call.1} parent=5 // pred_check_branch
      %147 = sbr.rel (%p145) target = $region16
    $region15: #{tpu_custom_call.1} parent=5 // pred_region
      // Predicated region
      $region17: #{tpu_custom_call.1} parent=15 // pred_check
        %p148 = pneg %p43
      $region18: #{tpu_custom_call.1} parent=15 // pred_check_branch
        %150 = sbr.rel (%p148) target = $region20
      $region19: #{tpu_custom_call.1} parent=15 // pred_region
        %s151 = smul.u32 2, %s17
        %p152 = scmp.lt.s32.totalorder %s16, 1
        %s153 = scalar_select %p152, %s16, 1
        %p154 = scmp.lt.s32.totalorder %s151, 1
        %s155 = scalar_select %p154, %s151, 1
        %s156 = smul.addr %s153, 2
        %s157 = sadd.s32 %s155, %s156
        %s158 = smul.addr %s157, 4
        %s159 = scalar_lea.vmem %s0, %s158
        %s160 = smul.u32 2, %s17
      $region20: #{tpu_custom_call.1} parent=15 // pred_fallthru
        _
      // Predicated region
      $region21: #{tpu_custom_call.1} parent=15 // pred_check
        %p161 = pneg %p69
      $region22: #{tpu_custom_call.1} parent=15 // pred_check_branch
        %163 = sbr.rel (%p161) target = $region24
      $region23: #{tpu_custom_call.1} parent=15 // pred_region
        %p164 = scmp.lt.s32.totalorder %s16, 1
        %s165 = scalar_select %p164, %s16, 1
        %s166 = smul.addr %s165, 3
        %s167 = smul.addr %s166, 8
        %s168 = scalar_lea.vmem %s1, %s167
      $region24: #{tpu_custom_call.1} parent=15 // pred_fallthru
        _
      // Predicated region
      $region25: #{tpu_custom_call.1} parent=15 // pred_check
        %p169 = pneg %p95
      $region26: #{tpu_custom_call.1} parent=15 // pred_check_branch
        %171 = sbr.rel (%p169) target = $region28
      $region27: #{tpu_custom_call.1} parent=15 // pred_region
        %p172 = scmp.lt.s32.totalorder %s16, 1
        %s173 = scalar_select %p172, %s16, 1
        %s174 = smul.addr %s173, 2
        %s175 = smul.addr %s174, 8
        %s176 = scalar_lea.vmem %s2, %s175
      $region28: #{tpu_custom_call.1} parent=15 // pred_fallthru
        _
    $region16: #{tpu_custom_call.1} parent=5 // pred_fallthru
      _
    %p177 = scmp.le.s32.totalorder 1, %s9
    %p178 = scmp.lt.s32.totalorder %s9, 3
    %p179 = pnand %p177, %p178
    %p180 = pneg %p179
    // Predicated region
    $region29: #{tpu_custom_call.1} parent=5 // pred_check
      _
    $region30: #{tpu_custom_call.1} parent=5 // pred_check_branch
      %182 = sbr.rel (%p179) target = $region32
    $region31: #{tpu_custom_call.1} parent=5 // pred_region
      %s183 = ssub.s32 %s9, 1
      %s184 = smul.u32 2, %s19
      %p185 = scmp.lt.s32.totalorder %s18, 1
      %s186 = scalar_select %p185, %s18, 1
      %p187 = scmp.lt.s32.totalorder %s184, 1
      %s188 = scalar_select %p187, %s184, 1
      %s189 = smul.addr %s186, 2
      %s190 = sadd.s32 %s188, %s189
      %s191 = smul.addr %s190, 4
      %s192 = scalar_lea.vmem %s0, %s191
      %p193 = pneg %p49
      %p194 = pneg %p46
      %p195 = scmp.lt.s32.totalorder %s18, 1
      %s196 = scalar_select %p195, %s18, 1
      %s197 = smul.addr %s196, 3
      %s198 = smul.addr %s197, 8
      %s199 = scalar_lea.vmem %s1, %s198
      %p200 = pneg %p75
      %p201 = pneg %p72
      %p202 = scmp.lt.s32.totalorder %s18, 1
      %s203 = scalar_select %p202, %s18, 1
      %s204 = smul.addr %s203, 2
      %s205 = smul.addr %s204, 8
      %s206 = scalar_lea.vmem %s2, %s205
      %p207 = pneg %p101
      %p208 = pneg %p98
      %p209 = pneg %p129
      %p210 = pneg %p126
      %s211 = smul.u32 2, %s19
      %p212 = scmp.lt.s32.totalorder %s18, 1
      %s213 = scalar_select %p212, %s18, 1
      %p214 = scmp.lt.s32.totalorder %s211, 1
      %s215 = scalar_select %p214, %s211, 1
      %s216 = smul.addr %s213, 2
      %s217 = sadd.s32 %s215, %s216
      %s218 = smul.addr %s217, 4
      %s219 = scalar_lea.vmem %s3, %s218
      %s220 = smul.u32 2, %s19
      %p221 = scmp.lt.s32.totalorder %s18, 1
      %s222 = scalar_select %p221, %s18, 1
      %p223 = scmp.lt.s32.totalorder %s220, 1
      %s224 = scalar_select %p223, %s220, 1
      %s225 = smul.addr %s222, 2
      %s226 = sadd.s32 %s224, %s225
      %s227 = smul.addr %s226, 4
      %s228 = scalar_lea.vmem %s0, %s227
      %s229 = smul.u32 2, %s19
      %p230 = scmp.lt.s32.totalorder %s18, 1
      %s231 = scalar_select %p230, %s18, 1
      %s232 = smul.addr %s231, 3
      %s233 = smul.addr %s232, 8
      %s234 = scalar_lea.vmem %s1, %s233
      %p235 = scmp.lt.s32.totalorder %s18, 1
      %s236 = scalar_select %p235, %s18, 1
      %s237 = smul.addr %s236, 2
      %s238 = smul.addr %s237, 8
      %s239 = scalar_lea.vmem %s2, %s238
      %s240 = smul.u32 2, %s19
      %p241 = scmp.lt.s32.totalorder %s18, 1
      %s242 = scalar_select %p241, %s18, 1
      %p243 = scmp.lt.s32.totalorder %s240, 1
      %s244 = scalar_select %p243, %s240, 1
      %s245 = smul.addr %s242, 2
      %s246 = sadd.s32 %s244, %s245
      %s247 = smul.addr %s246, 4
      %s248 = scalar_lea.vmem %s3, %s247
      %s249 = smul.u32 2, %s19
      %v250 = vld [vmem:[%s228] sm:$0x77]
      %v251 = vld [vmem:[%s234] sm:$0xff]
      %v252 = vld [vmem:[%s234 + $0x8] sm:$0xff]
      %v253 = vld [vmem:[%s234 + $0x10] sm:$0xff]
      %v255 = vcombine.high %v250, %v250
      %vm256 = vcmask 23552
      %v258 = vsel %vm256, %v251, 0
      %v261 = vsel %vm256, %v252, 0
      %v264 = vsel %vm256, %v253, 0
      %vm266 = vcmask 1042432
      %v267 = vsel %vm266, %v250, 0
      %v269 = vsel %vm266, %v255, 0
      %271 = vmatprep.subr.mxu0 0.0
      %272 = vmatpush1.msra.mxu0 0.0
      %273 = vmatprep.subr.mxu0 0.0
      %274 = vmatpush1.msra.mxu0 0.0
      %275 = vmatprep.subr.mxu0 0.0
      %276 = vmatpush1.msra.mxu0 0.0
      %277 = vmatprep.subr.mxu0 0.0
      %278 = vmatpush1.msra.mxu0 0.0
      %279 = vmatprep.subr.mxu0 0.0
      %280 = vmatpush1.msra.mxu0 0.0
      %281 = vmatprep.subr.mxu0 0.0
      %282 = vmatpush1.msra.mxu0 0.0
      %283 = vmatprep.subr.mxu0 0.0
      %284 = vmatpush1.msra.mxu0 0.0
      %285 = vmatprep.subr.mxu0 0.0
      %286 = vmatpush1.msra.mxu0 0.0
      %287 = vmatprep.subr.mxu0 0.0
      %288 = vmatpush1.msra.mxu0 0.0
      %289 = vmatprep.subr.mxu0 0.0
      %290 = vmatpush1.msra.mxu0 0.0
      %291 = vmatprep.subr.mxu0 0.0
      %292 = vmatpush1.msra.mxu0 0.0
      %293 = vmatprep.subr.mxu0 0.0
      %294 = vmatpush1.msra.mxu0 0.0
      %295 = vmatprep.subr.mxu0 0.0
      %296 = vmatpush1.msra.mxu0 0.0
      %297 = vmatprep.subr.mxu0 0.0
      %298 = vmatpush1.msra.mxu0 0.0
      %299 = vmatprep.subr.mxu0 0.0
      %300 = vmatpush1.msra.mxu0 0.0
      %301 = vmatprep.subr.mxu0 %v269
      %302 = vmatpush1.msra.mxu0 %v267
      %303 = vmatprep.subr.mxu0 0.0
      %304 = vmatpush2.msra.mxu0 0.0
      %305 = vmatprep.subr.mxu0 0.0
      %306 = vmatpush2.msra.mxu0 0.0
      %307 = vmatprep.subr.mxu0 0.0
      %308 = vmatpush2.msra.mxu0 0.0
      %309 = vmatprep.subr.mxu0 0.0
      %310 = vmatpush2.msra.mxu0 0.0
      %311 = vmatprep.subr.mxu0 0.0
      %312 = vmatpush2.msra.mxu0 0.0
      %313 = vmatprep.subr.mxu0 0.0
      %314 = vmatpush2.msra.mxu0 0.0
      %315 = vmatprep.subr.mxu0 0.0
      %316 = vmatpush2.msra.mxu0 0.0
      %317 = vmatprep.subr.mxu0 0.0
      %318 = vmatpush2.msra.mxu0 0.0
      %319 = vmatprep.subr.mxu0 0.0
      %320 = vmatpush2.msra.mxu0 0.0
      %321 = vmatprep.subr.mxu0 0.0
      %322 = vmatpush2.msra.mxu0 0.0
      %323 = vmatprep.subr.mxu0 0.0
      %324 = vmatpush2.msra.mxu0 0.0
      %325 = vmatprep.subr.mxu0 0.0
      %326 = vmatpush2.msra.mxu0 0.0
      %327 = vmatprep.subr.mxu0 0.0
      %328 = vmatpush2.msra.mxu0 0.0
      %329 = vmatprep.subr.mxu0 0.0
      %330 = vmatpush2.msra.mxu0 0.0
      %331 = vmatprep.subr.mxu0 0.0
      %332 = vmatpush2.msra.mxu0 0.0
      %333 = vmatprep.subr.mxu0 0.0
      %334 = vmatpush2.msra.mxu0 0.0
      %335 = vmatprep.mubr.f32.mxu0 0.0
      %336 = vmatmul.mubr.f32.gmra.mxu0 %v258
      %v337 = vpop.f32.mrf.mxu0
      %v338 = vadd.f32 0.0, %v337
      %v339 = vpop.f32.mrf.mxu0
      %v340 = vadd.f32 0.0, %v339
      %341 = vmatprep.mubr.f32.mxu0 0.0
      %342 = vmatmul.mubr.f32.gmra.mxu0 %v261
      %v343 = vpop.f32.mrf.mxu0
      %v344 = vadd.f32 0.0, %v343
      %v345 = vpop.f32.mrf.mxu0
      %v346 = vadd.f32 0.0, %v345
      %347 = vmatprep.mubr.f32.mxu0 0.0
      %348 = vmatmul.mubr.f32.gmra.mxu0 %v264
      %v349 = vpop.f32.mrf.mxu0
      %v350 = vadd.f32 0.0, %v349
      %v351 = vpop.f32.mrf.mxu0
      %v352 = vadd.f32 0.0, %v351
      %353 = vdwg.mxu0
      %v354 = vmul.f32 %v338, 2.0
      %v355 = vmul.f32 %v340, 2.0
      %v356 = vmul.f32 %v344, 2.0
      %v357 = vmul.f32 %v346, 2.0
      %v358 = vmul.f32 %v350, 2.0
      %v359 = vmul.f32 %v352, 2.0
      %360 = vset.pattern.permute.xlu0 3
      %361 = vperm.xlu0 %360, %v251
      %v362 = vpop.permute.xlu0 %361
      %364 = vset.pattern.permute.xlu0 3
      %365 = vperm.xlu0 %364, %v252
      %v366 = vpop.permute.xlu0 %365
      %368 = vset.pattern.permute.xlu0 3
      %369 = vperm.xlu0 %368, %v253
      %v370 = vpop.permute.xlu0 %369
      %v372 = vsub.f32 %v362, %v354
      %v373 = vsub.f32 %v362, %v355
      %v374 = vsub.f32 %v366, %v356
      %v375 = vsub.f32 %v366, %v357
      %v376 = vsub.f32 %v370, %v358
      %v377 = vsub.f32 %v370, %v359
      %v378 = vmin.f32 %v372, %v376
      %v379 = vmin.f32 %v378, %v374
      %v380 = vrot.slane %v379, 4
      %v381 = vmin.f32 %v379, %v380
      %v382 = vrot.slane %v381, 2
      %v383 = vmin.f32 %v381, %v382
      %v384 = vrot.slane %v383, 1
      %v385 = vmin.f32 %v383, %v384
      %v386 = vmin.f32 %v373, %v377
      %v387 = vmin.f32 %v386, %v375
      %v388 = vrot.slane %v387, 4
      %v389 = vmin.f32 %v387, %v388
      %v390 = vrot.slane %v389, 2
      %v391 = vmin.f32 %v389, %v390
      %v392 = vrot.slane %v391, 1
      %v393 = vmin.f32 %v391, %v392
      %v394 = vlaneseq
      %v395 = vshrl.u32 %v394, 7
      %v396 = vadd.s32 %v395, 8
      %v397 = vadd.s32 %v395, 16
      %vm398 = vcmp.le.f32.partialorder %v372, %v385
      %vm399 = vcmp.le.f32.partialorder %v373, %v393
      %vm400 = vcmp.le.f32.partialorder %v374, %v385
      %vm401 = vcmp.le.f32.partialorder %v375, %v393
      %vm402 = vcmp.le.f32.partialorder %v376, %v385
      %vm403 = vcmp.le.f32.partialorder %v377, %v393
      %v404 = vsel %vm398, %v395, 24
      %v405 = vsel %vm399, %v395, 24
      %v406 = vsel %vm400, %v396, 24
      %v407 = vsel %vm401, %v396, 24
      %v408 = vsel %vm402, %v397, 24
      %v409 = vsel %vm403, %v397, 24
      %vm410 = vcmp.lt.s32.totalorder %v404, %v408
      %v411 = vsel %vm410, %v404, %v408
      %vm412 = vcmp.lt.s32.totalorder %v411, %v406
      %v413 = vsel %vm412, %v411, %v406
      %v414 = vrot.slane %v413, 4
      %vm415 = vcmp.lt.s32.totalorder %v413, %v414
      %v416 = vsel %vm415, %v413, %v414
      %v417 = vrot.slane %v416, 2
      %vm418 = vcmp.lt.s32.totalorder %v416, %v417
      %v419 = vsel %vm418, %v416, %v417
      %v420 = vrot.slane %v419, 1
      %vm421 = vcmp.lt.s32.totalorder %v419, %v420
      %v422 = vsel %vm421, %v419, %v420
      %vm423 = vcmp.lt.s32.totalorder %v405, %v409
      %v424 = vsel %vm423, %v405, %v409
      %vm425 = vcmp.lt.s32.totalorder %v424, %v407
      %v426 = vsel %vm425, %v424, %v407
      %v427 = vrot.slane %v426, 4
      %vm428 = vcmp.lt.s32.totalorder %v426, %v427
      %v429 = vsel %vm428, %v426, %v427
      %v430 = vrot.slane %v429, 2
      %vm431 = vcmp.lt.s32.totalorder %v429, %v430
      %v432 = vsel %vm431, %v429, %v430
      %v433 = vrot.slane %v432, 1
      %vm434 = vcmp.lt.s32.totalorder %v432, %v433
      %v435 = vsel %vm434, %v432, %v433
      %vm436 = vcmp.eq.s32.totalorder %v395, %v422
      %vm437 = vcmp.eq.s32.totalorder %v395, %v435
      %vm438 = vcmp.eq.s32.totalorder %v396, %v422
      %vm439 = vcmp.eq.s32.totalorder %v396, %v435
      %vm440 = vcmp.eq.s32.totalorder %v397, %v422
      %vm441 = vcmp.eq.s32.totalorder %v397, %v435
      %v442 = vsel %vm436, 1, 0
      %v443 = vsel %vm437, 1, 0
      %v444 = vsel %vm438, 1, 0
      %v445 = vsel %vm439, 1, 0
      %v446 = vsel %vm440, 1, 0
      %v447 = vsel %vm441, 1, 0
      %v448 = vcvt.s32.f32 %v442
      %v449 = vcvt.s32.f32 %v443
      %v450 = vcvt.s32.f32 %v444
      %v451 = vcvt.s32.f32 %v445
      %v452 = vcvt.s32.f32 %v446
      %v453 = vcvt.s32.f32 %v447
      %v454 = vld [vmem:[%s239] sm:$0xff]
      %v455 = vld [vmem:[%s239 + $0x8] sm:$0xff]
      %vm456 = vcmask 195584
      %v458 = vsel %vm456, %v454, 0
      %v461 = vsel %vm456, %v455, 0
      %463 = vmatprep.subr.mxu0 0.0
      %464 = vmatpush1.msra.mxu0 0.0
      %465 = vmatprep.subr.mxu0 0.0
      %466 = vmatpush1.msra.mxu0 0.0
      %467 = vmatprep.subr.mxu0 0.0
      %468 = vmatpush1.msra.mxu0 0.0
      %469 = vmatprep.subr.mxu0 0.0
      %470 = vmatpush1.msra.mxu0 0.0
      %471 = vmatprep.subr.mxu0 0.0
      %472 = vmatpush1.msra.mxu0 0.0
      %473 = vmatprep.subr.mxu0 0.0
      %474 = vmatpush1.msra.mxu0 0.0
      %475 = vmatprep.subr.mxu0 0.0
      %476 = vmatpush1.msra.mxu0 0.0
      %477 = vmatprep.subr.mxu0 0.0
      %478 = vmatpush1.msra.mxu0 0.0
      %479 = vmatprep.subr.mxu0 0.0
      %480 = vmatpush1.msra.mxu0 0.0
      %481 = vmatprep.subr.mxu0 0.0
      %482 = vmatpush1.msra.mxu0 0.0
      %483 = vmatprep.subr.mxu0 0.0
      %484 = vmatpush1.msra.mxu0 0.0
      %485 = vmatprep.subr.mxu0 0.0
      %486 = vmatpush1.msra.mxu0 0.0
      %487 = vmatprep.subr.mxu0 0.0
      %488 = vmatpush1.msra.mxu0 0.0
      %489 = vmatprep.subr.mxu0 %v453
      %490 = vmatpush1.msra.mxu0 %v452
      %491 = vmatprep.subr.mxu0 %v451
      %492 = vmatpush1.msra.mxu0 %v450
      %493 = vmatprep.subr.mxu0 %v449
      %494 = vmatpush1.msra.mxu0 %v448
      %495 = vmatprep.subr.mxu0 0.0
      %496 = vmatpush2.msra.mxu0 0.0
      %497 = vmatprep.subr.mxu0 0.0
      %498 = vmatpush2.msra.mxu0 0.0
      %499 = vmatprep.subr.mxu0 0.0
      %500 = vmatpush2.msra.mxu0 0.0
      %501 = vmatprep.subr.mxu0 0.0
      %502 = vmatpush2.msra.mxu0 0.0
      %503 = vmatprep.subr.mxu0 0.0
      %504 = vmatpush2.msra.mxu0 0.0
      %505 = vmatprep.subr.mxu0 0.0
      %506 = vmatpush2.msra.mxu0 0.0
      %507 = vmatprep.subr.mxu0 0.0
      %508 = vmatpush2.msra.mxu0 0.0
      %509 = vmatprep.subr.mxu0 0.0
      %510 = vmatpush2.msra.mxu0 0.0
      %511 = vmatprep.subr.mxu0 0.0
      %512 = vmatpush2.msra.mxu0 0.0
      %513 = vmatprep.subr.mxu0 0.0
      %514 = vmatpush2.msra.mxu0 0.0
      %515 = vmatprep.subr.mxu0 0.0
      %516 = vmatpush2.msra.mxu0 0.0
      %517 = vmatprep.subr.mxu0 0.0
      %518 = vmatpush2.msra.mxu0 0.0
      %519 = vmatprep.subr.mxu0 0.0
      %520 = vmatpush2.msra.mxu0 0.0
      %521 = vmatprep.subr.mxu0 0.0
      %522 = vmatpush2.msra.mxu0 0.0
      %523 = vmatprep.subr.mxu0 0.0
      %524 = vmatpush2.msra.mxu0 0.0
      %525 = vmatprep.subr.mxu0 0.0
      %526 = vmatpush2.msra.mxu0 0.0
      %527 = vmatprep.mubr.f32.mxu0 0.0
      %528 = vmatmul.mubr.f32.gmra.mxu0 %v458
      %v529 = vpop.f32.mrf.mxu0
      %v530 = vadd.f32 0.0, %v529
      %v531 = vpop.f32.mrf.mxu0
      %v532 = vadd.f32 0.0, %v531
      %533 = vmatprep.mubr.f32.mxu0 0.0
      %534 = vmatmul.mubr.f32.gmra.mxu0 %v461
      %v535 = vpop.f32.mrf.mxu0
      %v536 = vadd.f32 0.0, %v535
      %v537 = vpop.f32.mrf.mxu0
      %v538 = vadd.f32 0.0, %v537
      %539 = vdwg.mxu0
      %v542 = vcombine.low %v530, %v532
      %v544 = vsub.f32 %v250, %v542
      %v547 = vcombine.low %v536, %v538
      %v549 = vmul.f32 %v544, %v547
      %v551 = vcombine.high %v549, %v549
      %v553 = vsel %vm266, %v549, 0.0
      %v554 = vrot.slane %v553, 4
      %v555 = vadd.f32 %v553, %v554
      %v556 = vrot.slane %v555, 2
      %v557 = vadd.f32 %v555, %v556
      %v558 = vrot.slane %v557, 1
      %v559 = vadd.f32 %v557, %v558
      %v560 = vsel %vm266, %v551, 0.0
      %v561 = vrot.slane %v560, 4
      %v562 = vadd.f32 %v560, %v561
      %v563 = vrot.slane %v562, 2
      %v564 = vadd.f32 %v562, %v563
      %v565 = vrot.slane %v564, 1
      %v566 = vadd.f32 %v564, %v565
      %v567 = vsub.f32 %v559, 0.002
      %v568 = vsub.f32 %v566, 0.002
      %v569 = vmin.f32 %v567, 0.0
      %v570 = vmin.f32 %v568, 0.0
      %v571 = vmul.f32 %v569, %v536
      %v572 = vmul.f32 %v570, %v538
      %v575 = vcombine.low %v571, %v572
      %v577 = vsub.f32 %v250, %v575
      %578 = vst [vmem:[%s248] sm:$0x77] %v577
      %s579 = smul.u32 2, %s19
      %p580 = scmp.lt.s32.totalorder %s18, 1
      %s581 = scalar_select %p580, %s18, 1
      %p582 = scmp.lt.s32.totalorder %s579, 1
      %s583 = scalar_select %p582, %s579, 1
      %s584 = smul.addr %s581, 2
      %s585 = sadd.s32 %s583, %s584
      %s586 = smul.addr %s585, 4
      %s587 = scalar_lea.vmem %s3, %s586
      // Predicated region
      $region33: #{tpu_custom_call.1} parent=31 // pred_check
        %p588 = pneg %p126
      $region34: #{tpu_custom_call.1} parent=31 // pred_check_branch
        %590 = sbr.rel (%p588) target = $region36
      $region35: #{tpu_custom_call.1} parent=31 // pred_region
        %s591 = smul.u32 2, %s19
      $region36: #{tpu_custom_call.1} parent=31 // pred_fallthru
        _
    $region32: #{tpu_custom_call.1} parent=5 // pred_fallthru
      _
    %p592 = scmp.le.s32.totalorder 2, %s9
    // Predicated region
    $region37: #{tpu_custom_call.1} parent=5 // pred_check
      %p593 = pneg %p592
    $region38: #{tpu_custom_call.1} parent=5 // pred_check_branch
      %595 = sbr.rel (%p593) target = $region40
    $region39: #{tpu_custom_call.1} parent=5 // pred_region
      %s596 = ssub.s32 %s9, 2
      // Predicated region
      $region41: #{tpu_custom_call.1} parent=39 // pred_check
        %p597 = pneg %p132
      $region42: #{tpu_custom_call.1} parent=39 // pred_check_branch
        %599 = sbr.rel (%p597) target = $region44
      $region43: #{tpu_custom_call.1} parent=39 // pred_region
        %s600 = smul.u32 2, %s21
        %p601 = scmp.lt.s32.totalorder %s20, 1
        %s602 = scalar_select %p601, %s20, 1
        %p603 = scmp.lt.s32.totalorder %s600, 1
        %s604 = scalar_select %p603, %s600, 1
        %s605 = smul.addr %s602, 2
        %s606 = sadd.s32 %s604, %s605
        %s607 = smul.addr %s606, 4
        %s608 = scalar_lea.vmem %s3, %s607
      $region44: #{tpu_custom_call.1} parent=39 // pred_fallthru
        _
    $region40: #{tpu_custom_call.1} parent=5 // pred_fallthru
      _
  $region6: #{tpu_custom_call.1} parent=0 // loop_footer
    %s13 = sadd.s32 1, %s9
  $region7: #{tpu_custom_call.1} parent=0 // loop_footer_branch
    %8 = sbr.rel target = $region3
  $region8: #{tpu_custom_call.1} parent=0 // loop_exit
    _

</llo_original>
